<compile_context>
chip_gen: v5e
topology: v5e:2x2
jax: 0.10.0
libtpu: 0.0.40
codegen_flags: <defaults>
</compile_context>

<pallas_src>
import functools
import math

import jax
import jax.numpy as jnp
from jax.experimental import pallas as pl
from jax.experimental.pallas import tpu as pltpu


def _cross_attention_kernel(xq_ref, yk_ref, yv_ref, bias_ref,
                            wq_ref, wk_ref, wv_ref, wo_ref, bo_ref,
                            out_ref, *, heads, dim_head):
    """One grid step handles `block_b` batch rows.

    Ref shapes:
      xq_ref  : (Bt, Nq, dim)  f32
      yk_ref  : (Bt, Nk, dim)  f32
      yv_ref  : (Bt, Nk, dim)  f32
      bias_ref: (Bt, 1,  Nk)   f32   additive pad-mask bias (0 or -1e9)
      wq_ref  : (dim, inner)   bf16  (softmax scale pre-folded)
      wk_ref  : (dim, inner)   bf16
      wv_ref  : (dim, inner)   bf16
      wo_ref  : (inner, dim)   bf16
      bo_ref  : (1, dim)       f32
      out_ref : (Bt, Nq, dim)
    """
    Bt, Nq, dim = xq_ref.shape
    _, Nk, _ = yk_ref.shape
    inner = heads * dim_head

    # ---- Fused whole-block Q/K/V projections (3 matmuls total) -------------
    # Leading-dim merges only (layout preserving); bf16 operands, f32 accumulate.
    xq = xq_ref[...].reshape(Bt * Nq, dim).astype(jnp.bfloat16)
    yk = yk_ref[...].reshape(Bt * Nk, dim).astype(jnp.bfloat16)
    yv = yv_ref[...].reshape(Bt * Nk, dim).astype(jnp.bfloat16)

    q_all = jnp.dot(xq, wq_ref[...], preferred_element_type=jnp.float32).astype(jnp.bfloat16)
    k_all = jnp.dot(yk, wk_ref[...], preferred_element_type=jnp.float32).astype(jnp.bfloat16)
    v_all = jnp.dot(yv, wv_ref[...], preferred_element_type=jnp.float32).astype(jnp.bfloat16)

    q3 = q_all.reshape(Bt, Nq, inner)      # heads stay packed on the lane axis
    k3 = k_all.reshape(Bt, Nk, inner)
    v3 = v_all.reshape(Bt, Nk, inner)

    # Pad-mask bias, broadcast ONCE per block (hoisted out of the head loop).
    bias = jnp.broadcast_to(bias_ref[...], (Bt, Nq, Nk))            # f32

    wo = wo_ref[...]                                                # (inner, dim) bf16
    bo = bo_ref[...]                                                # (1, dim)     f32

    # ---- Attention: batch rows are batched, heads are a small static unroll.
    # Each iteration is a full Bt-batched MXU op, so the unroll cost is ~heads,
    # not Bt*heads.  Head merge + output projection folded into the accumulator:
    #   out = sum_h softmax(q_h k_h^T + bias) v_h @ Wo[h*dh:(h+1)*dh, :]
    acc = jnp.zeros((Bt * Nq, dim), jnp.float32)
    for h in range(heads):
        sl = slice(h * dim_head, (h + 1) * dim_head)

        # Q.K^T contracting the LAST dims (no transposed K), batched over Bt.
        dots = jnp.einsum('bqd,bkd->bqk', q3[:, :, sl], k3[:, :, sl],
                          preferred_element_type=jnp.float32)        # (Bt, Nq, Nk)
        dots = dots + bias

        # Numerically stable softmax (exp on the EUP, divide via approx recip).
        m = jnp.max(dots, axis=-1, keepdims=True)
        e = jnp.exp(dots - m)
        p = e * pl.reciprocal(jnp.sum(e, axis=-1, keepdims=True), approx=True)

        pv = jnp.einsum('bqk,bkd->bqd', p.astype(jnp.bfloat16), v3[:, :, sl],
                        preferred_element_type=jnp.float32)          # (Bt, Nq, dh)
        acc = acc + jnp.dot(pv.reshape(Bt * Nq, dim_head).astype(jnp.bfloat16),
                            wo[sl, :], preferred_element_type=jnp.float32)

    # Single whole-block store (+ output bias).  Lane-dense whenever `dim` is a
    # multiple of 128 (production ViT dims); at dim=32 it is masked but tiny.
    # TODO(synk): dropout (training mode) not implemented (inference / p=0).
    out_ref[...] = (acc + bo).reshape(Bt, Nq, dim).astype(out_ref.dtype)


def _step_vmem_bytes(bt, Nq, Nk, dim, inner):
    """Rough per-grid-step VMEM footprint (bytes); used to size block_b."""
    io_f32 = 4 * (bt * Nq * dim + 2 * bt * Nk * dim + bt * Nk + bt * Nq * dim)
    weights = 2 * (3 * dim * inner + inner * dim) + 4 * dim
    proj_bf16 = 2 * bt * (Nq + 2 * Nk) * inner
    scores_f32 = 4 * bt * Nq * Nk * 3          # dots / exp / probs live together
    acc_f32 = 4 * bt * Nq * dim
    return 2 * io_f32 + weights + proj_bf16 + scores_f32 + acc_f32   # 2x: double-buffered I/O


def cross_attention(x_query, y_key, y_value, pad_mask,
                    wq, wk, wv, wo, bo, *, heads, dim_head, block_b=None):
    """Pallas forward of CrossAttention.  Weights are x @ W layout:
       wq/wk/wv: (dim, inner), wo: (inner, dim), bo: (1, dim)."""
    B, Nq, dim = x_query.shape
    _, Nk, _ = y_key.shape
    inner = heads * dim_head
    assert wq.shape == (dim, inner) and wk.shape == (dim, inner) and wv.shape == (dim, inner)
    assert wo.shape == (inner, dim)

    # block_b: fill the MXU M dim (block_b*Nq >= 256) within a VMEM budget,
    # preferring >=2 grid steps so "parallel" can shard over v7x's two TCs.
    # TODO(synk): Nk-tiled (online-softmax / flash) variant for very long
    # sequences; this kernel keeps the full Nk resident per grid step.
    budget = 32 * 1024 * 1024
    if block_b is None:
        divisors = [d for d in range(1, B + 1) if B % d == 0]
        fits = [d for d in divisors
                if _step_vmem_bytes(d, Nq, Nk, dim, inner) <= budget] or [1]
        mxu_full = [d for d in fits if d * Nq >= 256]
        two_step = [d for d in mxu_full if B // d >= 2]
        if two_step:
            block_b = min(two_step)
        elif mxu_full:
            block_b = min(mxu_full)
        else:
            block_b = max(fits)     # can't fill the MXU anyway -> fewest grid steps
    assert B % block_b == 0

    scale = dim_head ** (-0.5)

    # Wrapper-side (free, XLA) prep: bf16 weights in dense-lane layouts (half
    # the weight DMA bytes), softmax scale folded into Wq, additive mask bias.
    wq_b = (wq * scale).astype(jnp.bfloat16)
    wk_b = wk.astype(jnp.bfloat16)
    wv_b = wv.astype(jnp.bfloat16)
    wo_b = wo.astype(jnp.bfloat16)
    bo2 = bo.reshape(1, dim).astype(jnp.float32)
    mask_bias = jnp.where(pad_mask == 0.0,
                          jnp.float32(-1e9), jnp.float32(0.0)).reshape(B, 1, Nk)

    kernel = functools.partial(_cross_attention_kernel, heads=heads, dim_head=dim_head)

    # Weight/bias index_maps are constant, so the pipeliner only fetches them
    # once (no per-step re-DMA).  vmem_limit is only raised when the per-step
    # footprint actually needs it (kept <= 48 MiB for v7x's 64 MiB VMEM).
    est = _step_vmem_bytes(block_b, Nq, Nk, dim, inner)
    cp = dict(dimension_semantics=("parallel",))
    if est > 12 * 1024 * 1024:
        cp["vmem_limit_bytes"] = min(48 * 1024 * 1024, int(est * 3 // 2))

    return pl.pallas_call(
        kernel,
        out_shape=jax.ShapeDtypeStruct((B, Nq, dim), x_query.dtype),
        grid_spec=pltpu.PrefetchScalarGridSpec(
            num_scalar_prefetch=0,
            grid=(B // block_b,),
            in_specs=[
                pl.BlockSpec((block_b, Nq, dim), lambda b: (b, 0, 0)),   # x_query
                pl.BlockSpec((block_b, Nk, dim), lambda b: (b, 0, 0)),   # y_key
                pl.BlockSpec((block_b, Nk, dim), lambda b: (b, 0, 0)),   # y_value
                pl.BlockSpec((block_b, 1, Nk), lambda b: (b, 0, 0)),     # mask bias
                pl.BlockSpec((dim, inner), lambda b: (0, 0)),            # wq (scaled)
                pl.BlockSpec((dim, inner), lambda b: (0, 0)),            # wk
                pl.BlockSpec((dim, inner), lambda b: (0, 0)),            # wv
                pl.BlockSpec((inner, dim), lambda b: (0, 0)),            # wo
                pl.BlockSpec((1, dim), lambda b: (0, 0)),                # bo
            ],
            out_specs=pl.BlockSpec((block_b, Nq, dim), lambda b: (b, 0, 0)),
        ),
        compiler_params=pltpu.CompilerParams(**cp),
    )(x_query, y_key, y_value, mask_bias, wq_b, wk_b, wv_b, wo_b, bo2)


def cross_attention_ref(x_query, y_key, y_value, pad_mask,
                        wq, wk, wv, wo, bo, *, heads, dim_head):
    """Pure-JAX f32 reference mirroring the PyTorch forward."""
    B, Nq, dim = x_query.shape
    _, Nk, _ = y_key.shape
    scale = dim_head ** (-0.5)

    q = x_query @ wq
    k = y_key @ wk
    v = y_value @ wv

    def split(t, n):
        return t.reshape(B, n, heads, dim_head).transpose(0, 2, 1, 3)  # b h n d

    q, k, v = split(q, Nq), split(k, Nk), split(v, Nk)
    dots = jnp.einsum('bhid,bhjd->bhij', q, k) * scale
    mask4 = (pad_mask == 0.0)[:, None, None, :]
    dots = jnp.where(mask4, -1e9, dots)
    attn = jax.nn.softmax(dots, axis=-1)
    out = jnp.einsum('bhij,bhjd->bhid', attn, v)
    out = out.transpose(0, 2, 1, 3).reshape(B, Nq, heads * dim_head)
    return out @ wo + bo


if __name__ == "__main__":
    # Small, module-consistent shapes.
    B, Nq, Nk = 2, 8, 8
    dim, heads, dim_head = 32, 4, 8
    inner = heads * dim_head

    key = jax.random.PRNGKey(0)
    k1, k2, k3, k4, k5, k6, k7, k8 = jax.random.split(key, 8)

    x_query = jax.random.normal(k1, (B, Nq, dim), dtype=jnp.float32)
    y_key   = jax.random.normal(k2, (B, Nk, dim), dtype=jnp.float32)
    y_value = jax.random.normal(k3, (B, Nk, dim), dtype=jnp.float32)

    # pad_mask: 1 = keep, 0 = masked (last two keys of batch 1 masked).
    pad_mask = jnp.ones((B, Nk), dtype=jnp.float32)
    pad_mask = pad_mask.at[1, -2:].set(0.0)

    # Deterministic parameter init (Linear weights stored as x @ W matrices).
    bound_in = 1.0 / math.sqrt(dim)
    bound_out = 1.0 / math.sqrt(inner)
    wq = jax.random.uniform(k4, (dim, inner), jnp.float32, -bound_in, bound_in)
    wk = jax.random.uniform(k5, (dim, inner), jnp.float32, -bound_in, bound_in)
    wv = jax.random.uniform(k6, (dim, inner), jnp.float32, -bound_in, bound_in)
    wo = jax.random.uniform(k7, (inner, dim), jnp.float32, -bound_out, bound_out)
    bo = jax.random.uniform(k8, (1, dim), jnp.float32, -bound_out, bound_out)

    out = cross_attention(x_query, y_key, y_value, pad_mask,
                          wq, wk, wv, wo, bo, heads=heads, dim_head=dim_head)
    out = jax.block_until_ready(out)

    ref = cross_attention_ref(x_query, y_key, y_value, pad_mask,
                              wq, wk, wv, wo, bo, heads=heads, dim_head=dim_head)
    assert out.shape == (B, Nq, dim)
    # Kernel runs its matmuls in bf16 (f32 accumulate), so compare against the
    # f32 reference with a bf16-appropriate tolerance.
    assert jnp.allclose(out, ref, atol=3e-2, rtol=3e-2), "mismatch vs reference"

    print("KERNEL_OK")
</pallas_src>

<mosaic_0001>
module attributes {stable_mosaic.version = 11 : i64} {
  func.func @_cross_attention_kernel(%arg0: i32, %arg1: memref<2x8x32xf32, #tpu.memory_space<vmem>>, %arg2: memref<2x8x32xf32, #tpu.memory_space<vmem>>, %arg3: memref<2x8x32xf32, #tpu.memory_space<vmem>>, %arg4: memref<2x1x8xf32, #tpu.memory_space<vmem>>, %arg5: memref<32x32xbf16, #tpu.memory_space<vmem>>, %arg6: memref<32x32xbf16, #tpu.memory_space<vmem>>, %arg7: memref<32x32xbf16, #tpu.memory_space<vmem>>, %arg8: memref<32x32xbf16, #tpu.memory_space<vmem>>, %arg9: memref<1x32xf32, #tpu.memory_space<vmem>>, %arg10: memref<2x8x32xf32, #tpu.memory_space<vmem>>) attributes {dimension_semantics = [#tpu.dimension_semantics<parallel>], iteration_bounds = array<i64: 1>, scalar_prefetch = 0 : i64, scratch_operands = 0 : i64, tpu.core_type = #tpu.core_type<tc>, window_params = [{transform_indices = @transform_0, window_bounds = array<i64: 2, 8, 32>}, {transform_indices = @transform_1, window_bounds = array<i64: 2, 8, 32>}, {transform_indices = @transform_2, window_bounds = array<i64: 2, 8, 32>}, {transform_indices = @transform_3, window_bounds = array<i64: 2, 1, 8>}, {pipeline_mode = #tpu.pipeline_mode<synchronous>, transform_indices = @transform_4, window_bounds = array<i64: 32, 32>}, {pipeline_mode = #tpu.pipeline_mode<synchronous>, transform_indices = @transform_5, window_bounds = array<i64: 32, 32>}, {pipeline_mode = #tpu.pipeline_mode<synchronous>, transform_indices = @transform_6, window_bounds = array<i64: 32, 32>}, {pipeline_mode = #tpu.pipeline_mode<synchronous>, transform_indices = @transform_7, window_bounds = array<i64: 32, 32>}, {pipeline_mode = #tpu.pipeline_mode<synchronous>, transform_indices = @transform_8, window_bounds = array<i64: 1, 32>}, {transform_indices = @transform_9, window_bounds = array<i64: 2, 8, 32>}]} {
    %c0 = arith.constant 0 : index
    %c0_0 = arith.constant 0 : index
    %c0_1 = arith.constant 0 : index
    %0 = vector.load %arg1[%c0, %c0_0, %c0_1] : memref<2x8x32xf32, #tpu.memory_space<vmem>>, vector<2x8x32xf32>
    %1 = vector.shape_cast %0 : vector<2x8x32xf32> to vector<16x32xf32>
    %2 = arith.truncf %1 : vector<16x32xf32> to vector<16x32xbf16>
    %c0_2 = arith.constant 0 : index
    %c0_3 = arith.constant 0 : index
    %c0_4 = arith.constant 0 : index
    %3 = vector.load %arg2[%c0_2, %c0_3, %c0_4] : memref<2x8x32xf32, #tpu.memory_space<vmem>>, vector<2x8x32xf32>
    %4 = vector.shape_cast %3 : vector<2x8x32xf32> to vector<16x32xf32>
    %5 = arith.truncf %4 : vector<16x32xf32> to vector<16x32xbf16>
    %c0_5 = arith.constant 0 : index
    %c0_6 = arith.constant 0 : index
    %c0_7 = arith.constant 0 : index
    %6 = vector.load %arg3[%c0_5, %c0_6, %c0_7] : memref<2x8x32xf32, #tpu.memory_space<vmem>>, vector<2x8x32xf32>
    %7 = vector.shape_cast %6 : vector<2x8x32xf32> to vector<16x32xf32>
    %8 = arith.truncf %7 : vector<16x32xf32> to vector<16x32xbf16>
    %c0_8 = arith.constant 0 : index
    %c0_9 = arith.constant 0 : index
    %9 = vector.load %arg5[%c0_8, %c0_9] : memref<32x32xbf16, #tpu.memory_space<vmem>>, vector<32x32xbf16>
    %cst = arith.constant dense<0.000000e+00> : vector<16x32xf32>
    %10 = tpu.matmul %2, %9, %cst {dimension_numbers = #tpu.dot_dimension_numbers<[1], [0], [0], [1], [0, 0, 1, 1], [], []>} : vector<16x32xbf16>, vector<32x32xbf16>, vector<16x32xf32> -> vector<16x32xf32>
    %11 = arith.truncf %10 : vector<16x32xf32> to vector<16x32xbf16>
    %c0_10 = arith.constant 0 : index
    %c0_11 = arith.constant 0 : index
    %12 = vector.load %arg6[%c0_10, %c0_11] : memref<32x32xbf16, #tpu.memory_space<vmem>>, vector<32x32xbf16>
    %cst_12 = arith.constant dense<0.000000e+00> : vector<16x32xf32>
    %13 = tpu.matmul %5, %12, %cst_12 {dimension_numbers = #tpu.dot_dimension_numbers<[1], [0], [0], [1], [0, 0, 1, 1], [], []>} : vector<16x32xbf16>, vector<32x32xbf16>, vector<16x32xf32> -> vector<16x32xf32>
    %14 = arith.truncf %13 : vector<16x32xf32> to vector<16x32xbf16>
    %c0_13 = arith.constant 0 : index
    %c0_14 = arith.constant 0 : index
    %15 = vector.load %arg7[%c0_13, %c0_14] : memref<32x32xbf16, #tpu.memory_space<vmem>>, vector<32x32xbf16>
    %cst_15 = arith.constant dense<0.000000e+00> : vector<16x32xf32>
    %16 = tpu.matmul %8, %15, %cst_15 {dimension_numbers = #tpu.dot_dimension_numbers<[1], [0], [0], [1], [0, 0, 1, 1], [], []>} : vector<16x32xbf16>, vector<32x32xbf16>, vector<16x32xf32> -> vector<16x32xf32>
    %17 = arith.truncf %16 : vector<16x32xf32> to vector<16x32xbf16>
    %18 = vector.shape_cast %11 : vector<16x32xbf16> to vector<2x8x32xbf16>
    %19 = vector.shape_cast %14 : vector<16x32xbf16> to vector<2x8x32xbf16>
    %20 = vector.shape_cast %17 : vector<16x32xbf16> to vector<2x8x32xbf16>
    %c0_16 = arith.constant 0 : index
    %c0_17 = arith.constant 0 : index
    %c0_18 = arith.constant 0 : index
    %21 = vector.load %arg4[%c0_16, %c0_17, %c0_18] : memref<2x1x8xf32, #tpu.memory_space<vmem>>, vector<2x1x8xf32>
    %22 = vector.shape_cast %21 : vector<2x1x8xf32> to vector<2x1x8xf32>
    %23 = vector.broadcast %22 : vector<2x1x8xf32> to vector<2x8x8xf32>
    %c0_19 = arith.constant 0 : index
    %c0_20 = arith.constant 0 : index
    %24 = vector.load %arg8[%c0_19, %c0_20] : memref<32x32xbf16, #tpu.memory_space<vmem>>, vector<32x32xbf16>
    %c0_21 = arith.constant 0 : index
    %c0_22 = arith.constant 0 : index
    %25 = vector.load %arg9[%c0_21, %c0_22] : memref<1x32xf32, #tpu.memory_space<vmem>>, vector<1x32xf32>
    %cst_23 = arith.constant 0.000000e+00 : f32
    %26 = vector.broadcast %cst_23 : f32 to vector<16x32xf32>
    %27 = vector.extract_strided_slice %18 {offsets = [0, 0, 0], sizes = [2, 8, 8], strides = [1, 1, 1]} : vector<2x8x32xbf16> to vector<2x8x8xbf16>
    %28 = vector.extract_strided_slice %19 {offsets = [0, 0, 0], sizes = [2, 8, 8], strides = [1, 1, 1]} : vector<2x8x32xbf16> to vector<2x8x8xbf16>
    "tpu.trace_start"() <{level = 10 : i32, message = "bqd,bkd->bqk"}> : () -> ()
    %cst_24 = arith.constant dense<0.000000e+00> : vector<2x8x8xf32>
    %29 = tpu.matmul %27, %28, %cst_24 {dimension_numbers = #tpu.dot_dimension_numbers<[2], [2], [1], [1], [0, 0, 0, 1, 1, 1], [0], [0]>} : vector<2x8x8xbf16>, vector<2x8x8xbf16>, vector<2x8x8xf32> -> vector<2x8x8xf32>
    "tpu.trace_stop"() : () -> ()
    %30 = arith.addf %29, %23 : vector<2x8x8xf32>
    %cst_25 = arith.constant dense<0xFF800000> : vector<2x8xf32>
    %31 = vector.multi_reduction <maximumf>, %30, %cst_25 [2] : vector<2x8x8xf32> to vector<2x8xf32>
    %32 = vector.shape_cast %31 : vector<2x8xf32> to vector<2x8x1xf32>
    %33 = vector.broadcast %32 : vector<2x8x1xf32> to vector<2x8x8xf32>
    %34 = arith.subf %30, %33 : vector<2x8x8xf32>
    %35 = math.exp %34 : vector<2x8x8xf32>
    %cst_26 = arith.constant dense<0.000000e+00> : vector<2x8xf32>
    %36 = vector.multi_reduction <add>, %35, %cst_26 [2] : vector<2x8x8xf32> to vector<2x8xf32>
    %37 = vector.shape_cast %36 : vector<2x8xf32> to vector<2x8x1xf32>
    %38 = tpu.reciprocal %37 {approx = true} : vector<2x8x1xf32> -> vector<2x8x1xf32>
    %39 = vector.broadcast %38 : vector<2x8x1xf32> to vector<2x8x8xf32>
    %40 = arith.mulf %35, %39 : vector<2x8x8xf32>
    %41 = arith.truncf %40 : vector<2x8x8xf32> to vector<2x8x8xbf16>
    %42 = vector.extract_strided_slice %20 {offsets = [0, 0, 0], sizes = [2, 8, 8], strides = [1, 1, 1]} : vector<2x8x32xbf16> to vector<2x8x8xbf16>
    "tpu.trace_start"() <{level = 10 : i32, message = "bqk,bkd->bqd"}> : () -> ()
    %cst_27 = arith.constant dense<0.000000e+00> : vector<2x8x8xf32>
    %43 = tpu.matmul %41, %42, %cst_27 {dimension_numbers = #tpu.dot_dimension_numbers<[2], [1], [1], [2], [0, 0, 0, 1, 1, 2], [0], [0]>} : vector<2x8x8xbf16>, vector<2x8x8xbf16>, vector<2x8x8xf32> -> vector<2x8x8xf32>
    "tpu.trace_stop"() : () -> ()
    %44 = vector.shape_cast %43 : vector<2x8x8xf32> to vector<16x8xf32>
    %45 = arith.truncf %44 : vector<16x8xf32> to vector<16x8xbf16>
    %46 = vector.extract_strided_slice %24 {offsets = [0, 0], sizes = [8, 32], strides = [1, 1]} : vector<32x32xbf16> to vector<8x32xbf16>
    %cst_28 = arith.constant dense<0.000000e+00> : vector<16x32xf32>
    %47 = tpu.matmul %45, %46, %cst_28 {dimension_numbers = #tpu.dot_dimension_numbers<[1], [0], [0], [1], [0, 0, 1, 1], [], []>} : vector<16x8xbf16>, vector<8x32xbf16>, vector<16x32xf32> -> vector<16x32xf32>
    %48 = arith.addf %26, %47 : vector<16x32xf32>
    %49 = vector.extract_strided_slice %18 {offsets = [0, 0, 8], sizes = [2, 8, 8], strides = [1, 1, 1]} : vector<2x8x32xbf16> to vector<2x8x8xbf16>
    %50 = vector.extract_strided_slice %19 {offsets = [0, 0, 8], sizes = [2, 8, 8], strides = [1, 1, 1]} : vector<2x8x32xbf16> to vector<2x8x8xbf16>
    "tpu.trace_start"() <{level = 10 : i32, message = "bqd,bkd->bqk"}> : () -> ()
    %cst_29 = arith.constant dense<0.000000e+00> : vector<2x8x8xf32>
    %51 = tpu.matmul %49, %50, %cst_29 {dimension_numbers = #tpu.dot_dimension_numbers<[2], [2], [1], [1], [0, 0, 0, 1, 1, 1], [0], [0]>} : vector<2x8x8xbf16>, vector<2x8x8xbf16>, vector<2x8x8xf32> -> vector<2x8x8xf32>
    "tpu.trace_stop"() : () -> ()
    %52 = arith.addf %51, %23 : vector<2x8x8xf32>
    %cst_30 = arith.constant dense<0xFF800000> : vector<2x8xf32>
    %53 = vector.multi_reduction <maximumf>, %52, %cst_30 [2] : vector<2x8x8xf32> to vector<2x8xf32>
    %54 = vector.shape_cast %53 : vector<2x8xf32> to vector<2x8x1xf32>
    %55 = vector.broadcast %54 : vector<2x8x1xf32> to vector<2x8x8xf32>
    %56 = arith.subf %52, %55 : vector<2x8x8xf32>
    %57 = math.exp %56 : vector<2x8x8xf32>
    %cst_31 = arith.constant dense<0.000000e+00> : vector<2x8xf32>
    %58 = vector.multi_reduction <add>, %57, %cst_31 [2] : vector<2x8x8xf32> to vector<2x8xf32>
    %59 = vector.shape_cast %58 : vector<2x8xf32> to vector<2x8x1xf32>
    %60 = tpu.reciprocal %59 {approx = true} : vector<2x8x1xf32> -> vector<2x8x1xf32>
    %61 = vector.broadcast %60 : vector<2x8x1xf32> to vector<2x8x8xf32>
    %62 = arith.mulf %57, %61 : vector<2x8x8xf32>
    %63 = arith.truncf %62 : vector<2x8x8xf32> to vector<2x8x8xbf16>
    %64 = vector.extract_strided_slice %20 {offsets = [0, 0, 8], sizes = [2, 8, 8], strides = [1, 1, 1]} : vector<2x8x32xbf16> to vector<2x8x8xbf16>
    "tpu.trace_start"() <{level = 10 : i32, message = "bqk,bkd->bqd"}> : () -> ()
    %cst_32 = arith.constant dense<0.000000e+00> : vector<2x8x8xf32>
    %65 = tpu.matmul %63, %64, %cst_32 {dimension_numbers = #tpu.dot_dimension_numbers<[2], [1], [1], [2], [0, 0, 0, 1, 1, 2], [0], [0]>} : vector<2x8x8xbf16>, vector<2x8x8xbf16>, vector<2x8x8xf32> -> vector<2x8x8xf32>
    "tpu.trace_stop"() : () -> ()
    %66 = vector.shape_cast %65 : vector<2x8x8xf32> to vector<16x8xf32>
    %67 = arith.truncf %66 : vector<16x8xf32> to vector<16x8xbf16>
    %68 = vector.extract_strided_slice %24 {offsets = [8, 0], sizes = [8, 32], strides = [1, 1]} : vector<32x32xbf16> to vector<8x32xbf16>
    %cst_33 = arith.constant dense<0.000000e+00> : vector<16x32xf32>
    %69 = tpu.matmul %67, %68, %cst_33 {dimension_numbers = #tpu.dot_dimension_numbers<[1], [0], [0], [1], [0, 0, 1, 1], [], []>} : vector<16x8xbf16>, vector<8x32xbf16>, vector<16x32xf32> -> vector<16x32xf32>
    %70 = arith.addf %48, %69 : vector<16x32xf32>
    %71 = vector.extract_strided_slice %18 {offsets = [0, 0, 16], sizes = [2, 8, 8], strides = [1, 1, 1]} : vector<2x8x32xbf16> to vector<2x8x8xbf16>
    %72 = vector.extract_strided_slice %19 {offsets = [0, 0, 16], sizes = [2, 8, 8], strides = [1, 1, 1]} : vector<2x8x32xbf16> to vector<2x8x8xbf16>
    "tpu.trace_start"() <{level = 10 : i32, message = "bqd,bkd->bqk"}> : () -> ()
    %cst_34 = arith.constant dense<0.000000e+00> : vector<2x8x8xf32>
    %73 = tpu.matmul %71, %72, %cst_34 {dimension_numbers = #tpu.dot_dimension_numbers<[2], [2], [1], [1], [0, 0, 0, 1, 1, 1], [0], [0]>} : vector<2x8x8xbf16>, vector<2x8x8xbf16>, vector<2x8x8xf32> -> vector<2x8x8xf32>
    "tpu.trace_stop"() : () -> ()
    %74 = arith.addf %73, %23 : vector<2x8x8xf32>
    %cst_35 = arith.constant dense<0xFF800000> : vector<2x8xf32>
    %75 = vector.multi_reduction <maximumf>, %74, %cst_35 [2] : vector<2x8x8xf32> to vector<2x8xf32>
    %76 = vector.shape_cast %75 : vector<2x8xf32> to vector<2x8x1xf32>
    %77 = vector.broadcast %76 : vector<2x8x1xf32> to vector<2x8x8xf32>
    %78 = arith.subf %74, %77 : vector<2x8x8xf32>
    %79 = math.exp %78 : vector<2x8x8xf32>
    %cst_36 = arith.constant dense<0.000000e+00> : vector<2x8xf32>
    %80 = vector.multi_reduction <add>, %79, %cst_36 [2] : vector<2x8x8xf32> to vector<2x8xf32>
    %81 = vector.shape_cast %80 : vector<2x8xf32> to vector<2x8x1xf32>
    %82 = tpu.reciprocal %81 {approx = true} : vector<2x8x1xf32> -> vector<2x8x1xf32>
    %83 = vector.broadcast %82 : vector<2x8x1xf32> to vector<2x8x8xf32>
    %84 = arith.mulf %79, %83 : vector<2x8x8xf32>
    %85 = arith.truncf %84 : vector<2x8x8xf32> to vector<2x8x8xbf16>
    %86 = vector.extract_strided_slice %20 {offsets = [0, 0, 16], sizes = [2, 8, 8], strides = [1, 1, 1]} : vector<2x8x32xbf16> to vector<2x8x8xbf16>
    "tpu.trace_start"() <{level = 10 : i32, message = "bqk,bkd->bqd"}> : () -> ()
    %cst_37 = arith.constant dense<0.000000e+00> : vector<2x8x8xf32>
    %87 = tpu.matmul %85, %86, %cst_37 {dimension_numbers = #tpu.dot_dimension_numbers<[2], [1], [1], [2], [0, 0, 0, 1, 1, 2], [0], [0]>} : vector<2x8x8xbf16>, vector<2x8x8xbf16>, vector<2x8x8xf32> -> vector<2x8x8xf32>
    "tpu.trace_stop"() : () -> ()
    %88 = vector.shape_cast %87 : vector<2x8x8xf32> to vector<16x8xf32>
    %89 = arith.truncf %88 : vector<16x8xf32> to vector<16x8xbf16>
    %90 = vector.extract_strided_slice %24 {offsets = [16, 0], sizes = [8, 32], strides = [1, 1]} : vector<32x32xbf16> to vector<8x32xbf16>
    %cst_38 = arith.constant dense<0.000000e+00> : vector<16x32xf32>
    %91 = tpu.matmul %89, %90, %cst_38 {dimension_numbers = #tpu.dot_dimension_numbers<[1], [0], [0], [1], [0, 0, 1, 1], [], []>} : vector<16x8xbf16>, vector<8x32xbf16>, vector<16x32xf32> -> vector<16x32xf32>
    %92 = arith.addf %70, %91 : vector<16x32xf32>
    %93 = vector.extract_strided_slice %18 {offsets = [0, 0, 24], sizes = [2, 8, 8], strides = [1, 1, 1]} : vector<2x8x32xbf16> to vector<2x8x8xbf16>
    %94 = vector.extract_strided_slice %19 {offsets = [0, 0, 24], sizes = [2, 8, 8], strides = [1, 1, 1]} : vector<2x8x32xbf16> to vector<2x8x8xbf16>
    "tpu.trace_start"() <{level = 10 : i32, message = "bqd,bkd->bqk"}> : () -> ()
    %cst_39 = arith.constant dense<0.000000e+00> : vector<2x8x8xf32>
    %95 = tpu.matmul %93, %94, %cst_39 {dimension_numbers = #tpu.dot_dimension_numbers<[2], [2], [1], [1], [0, 0, 0, 1, 1, 1], [0], [0]>} : vector<2x8x8xbf16>, vector<2x8x8xbf16>, vector<2x8x8xf32> -> vector<2x8x8xf32>
    "tpu.trace_stop"() : () -> ()
    %96 = arith.addf %95, %23 : vector<2x8x8xf32>
    %cst_40 = arith.constant dense<0xFF800000> : vector<2x8xf32>
    %97 = vector.multi_reduction <maximumf>, %96, %cst_40 [2] : vector<2x8x8xf32> to vector<2x8xf32>
    %98 = vector.shape_cast %97 : vector<2x8xf32> to vector<2x8x1xf32>
    %99 = vector.broadcast %98 : vector<2x8x1xf32> to vector<2x8x8xf32>
    %100 = arith.subf %96, %99 : vector<2x8x8xf32>
    %101 = math.exp %100 : vector<2x8x8xf32>
    %cst_41 = arith.constant dense<0.000000e+00> : vector<2x8xf32>
    %102 = vector.multi_reduction <add>, %101, %cst_41 [2] : vector<2x8x8xf32> to vector<2x8xf32>
    %103 = vector.shape_cast %102 : vector<2x8xf32> to vector<2x8x1xf32>
    %104 = tpu.reciprocal %103 {approx = true} : vector<2x8x1xf32> -> vector<2x8x1xf32>
    %105 = vector.broadcast %104 : vector<2x8x1xf32> to vector<2x8x8xf32>
    %106 = arith.mulf %101, %105 : vector<2x8x8xf32>
    %107 = arith.truncf %106 : vector<2x8x8xf32> to vector<2x8x8xbf16>
    %108 = vector.extract_strided_slice %20 {offsets = [0, 0, 24], sizes = [2, 8, 8], strides = [1, 1, 1]} : vector<2x8x32xbf16> to vector<2x8x8xbf16>
    "tpu.trace_start"() <{level = 10 : i32, message = "bqk,bkd->bqd"}> : () -> ()
    %cst_42 = arith.constant dense<0.000000e+00> : vector<2x8x8xf32>
    %109 = tpu.matmul %107, %108, %cst_42 {dimension_numbers = #tpu.dot_dimension_numbers<[2], [1], [1], [2], [0, 0, 0, 1, 1, 2], [0], [0]>} : vector<2x8x8xbf16>, vector<2x8x8xbf16>, vector<2x8x8xf32> -> vector<2x8x8xf32>
    "tpu.trace_stop"() : () -> ()
    %110 = vector.shape_cast %109 : vector<2x8x8xf32> to vector<16x8xf32>
    %111 = arith.truncf %110 : vector<16x8xf32> to vector<16x8xbf16>
    %112 = vector.extract_strided_slice %24 {offsets = [24, 0], sizes = [8, 32], strides = [1, 1]} : vector<32x32xbf16> to vector<8x32xbf16>
    %cst_43 = arith.constant dense<0.000000e+00> : vector<16x32xf32>
    %113 = tpu.matmul %111, %112, %cst_43 {dimension_numbers = #tpu.dot_dimension_numbers<[1], [0], [0], [1], [0, 0, 1, 1], [], []>} : vector<16x8xbf16>, vector<8x32xbf16>, vector<16x32xf32> -> vector<16x32xf32>
    %114 = arith.addf %92, %113 : vector<16x32xf32>
    %115 = vector.broadcast %25 : vector<1x32xf32> to vector<16x32xf32>
    %116 = arith.addf %114, %115 : vector<16x32xf32>
    %117 = vector.shape_cast %116 : vector<16x32xf32> to vector<2x8x32xf32>
    %c0_44 = arith.constant 0 : index
    %c0_45 = arith.constant 0 : index
    %c0_46 = arith.constant 0 : index
    %118 = vector.load %arg10[%c0_44, %c0_45, %c0_46] : memref<2x8x32xf32, #tpu.memory_space<vmem>>, vector<2x8x32xf32>
    tpu.vector_store %arg10[%c0_44, %c0_45, %c0_46], %117 {strides = array<i32>} : memref<2x8x32xf32, #tpu.memory_space<vmem>>, vector<2x8x32xf32>,
    return
  }
  func.func @transform_0(%arg0: i32) -> (i32, i32, i32) {
    %c0_i32 = arith.constant 0 : i32
    %c0_i32_0 = arith.constant 0 : i32
    %c0_i32_1 = arith.constant 0 : i32
    return %arg0, %c0_i32, %c0_i32_0 : i32, i32, i32
  }
  func.func @transform_1(%arg0: i32) -> (i32, i32, i32) {
    %c0_i32 = arith.constant 0 : i32
    %c0_i32_0 = arith.constant 0 : i32
    %c0_i32_1 = arith.constant 0 : i32
    return %arg0, %c0_i32, %c0_i32_0 : i32, i32, i32
  }
  func.func @transform_2(%arg0: i32) -> (i32, i32, i32) {
    %c0_i32 = arith.constant 0 : i32
    %c0_i32_0 = arith.constant 0 : i32
    %c0_i32_1 = arith.constant 0 : i32
    return %arg0, %c0_i32, %c0_i32_0 : i32, i32, i32
  }
  func.func @transform_3(%arg0: i32) -> (i32, i32, i32) {
    %c0_i32 = arith.constant 0 : i32
    %c0_i32_0 = arith.constant 0 : i32
    %c0_i32_1 = arith.constant 0 : i32
    return %arg0, %c0_i32, %c0_i32_0 : i32, i32, i32
  }
  func.func @transform_4(%arg0: i32) -> (i32, i32) {
    %c0_i32 = arith.constant 0 : i32
    %c0_i32_0 = arith.constant 0 : i32
    %c0_i32_1 = arith.constant 0 : i32
    return %c0_i32, %c0_i32_0 : i32, i32
  }
  func.func @transform_5(%arg0: i32) -> (i32, i32) {
    %c0_i32 = arith.constant 0 : i32
    %c0_i32_0 = arith.constant 0 : i32
    %c0_i32_1 = arith.constant 0 : i32
    return %c0_i32, %c0_i32_0 : i32, i32
  }
  func.func @transform_6(%arg0: i32) -> (i32, i32) {
    %c0_i32 = arith.constant 0 : i32
    %c0_i32_0 = arith.constant 0 : i32
    %c0_i32_1 = arith.constant 0 : i32
    return %c0_i32, %c0_i32_0 : i32, i32
  }
  func.func @transform_7(%arg0: i32) -> (i32, i32) {
    %c0_i32 = arith.constant 0 : i32
    %c0_i32_0 = arith.constant 0 : i32
    %c0_i32_1 = arith.constant 0 : i32
    return %c0_i32, %c0_i32_0 : i32, i32
  }
  func.func @transform_8(%arg0: i32) -> (i32, i32) {
    %c0_i32 = arith.constant 0 : i32
    %c0_i32_0 = arith.constant 0 : i32
    %c0_i32_1 = arith.constant 0 : i32
    return %c0_i32, %c0_i32_0 : i32, i32
  }
  func.func @transform_9(%arg0: i32) -> (i32, i32, i32) {
    %c0_i32 = arith.constant 0 : i32
    %c0_i32_0 = arith.constant 0 : i32
    %c0_i32_1 = arith.constant 0 : i32
    return %arg0, %c0_i32, %c0_i32_0 : i32, i32, i32
  }
}

</mosaic_0001>

<llo_original>
// kernel: tpu_custom_call.1
$region0: #{tpu_custom_call.1}
  #allocation0 [shape = 'u32[]', space=smem, size = 0x4, offset = 0x4, fixed_abs, tag = 'smem constant byte address 0x4 - core index']
  #allocation1 [shape = 'u32[72,128]{1,0:T(1,128)}', space=vmem, size = 0x9000, scoped, tag = 'internal scratch']
  %s0 = inlined_call_operand.hbm [shape: f32[2,8,32], index: 0, kind: input, shape index: {}]
  %s1 = inlined_call_operand.hbm [shape: f32[2,8,32], index: 1, kind: input, shape index: {}]
  %s2 = inlined_call_operand.hbm [shape: f32[2,8,32], index: 2, kind: input, shape index: {}]
  %s3 = inlined_call_operand.vmem [shape: f32[2,1,8], index: 3, kind: input, shape index: {}]
  %s4 = inlined_call_operand.hbm [shape: bf16[32,32], index: 4, kind: input, shape index: {}]
  %s5 = inlined_call_operand.hbm [shape: bf16[32,32], index: 5, kind: input, shape index: {}]
  %s6 = inlined_call_operand.hbm [shape: bf16[32,32], index: 6, kind: input, shape index: {}]
  %s7 = inlined_call_operand.hbm [shape: bf16[32,32], index: 7, kind: input, shape index: {}]
  %s8 = inlined_call_operand.vmem [shape: f32[1,32], index: 8, kind: input, shape index: {}]
  %s9 = inlined_call_operand.hbm [shape: f32[2,8,32], index: 9, kind: output, shape index: {}]
  %s10 = sld [smem:[#allocation0]]
  $region74: #{tpu_custom_call.1} parent=0
    _
  %s12 = ssub.s32 1, %s10
  %s13 = scalar_select 0, %s12, %s10
  $region1: #{tpu_custom_call.1} parent=0
    #allocation2 [shape = 'u8[8192]{0}', space=vmem, size = 0x2000, scoped, tag = 'input window, operand 0, single buffered']
    #allocation3 [shape = 's32[1]{0}', space=sflag, size = 0x4, scoped, tag = 'scoped memory for tpu_custom_call.1']
    #allocation4 [shape = 's32[1]{0}', space=sflag, size = 0x4, scoped, tag = 'scoped memory for tpu_custom_call.1']
    #allocation5 [shape = 'u8[8192]{0}', space=vmem, size = 0x2000, scoped, tag = 'input window, operand 1, single buffered']
    #allocation6 [shape = 's32[1]{0}', space=sflag, size = 0x4, scoped, tag = 'scoped memory for tpu_custom_call.1']
    #allocation7 [shape = 'u8[8192]{0}', space=vmem, size = 0x2000, scoped, tag = 'input window, operand 2, single buffered']
    #allocation8 [shape = 'u8[8192]{0}', space=vmem, size = 0x2000, scoped, tag = 'input window, operand 4, single buffered']
    #allocation9 [shape = 's32[1]{0}', space=sflag, size = 0x4, scoped, tag = 'scoped memory for tpu_custom_call.1']
    #allocation10 [shape = 'u8[8192]{0}', space=vmem, size = 0x2000, scoped, tag = 'input window, operand 5, single buffered']
    #allocation11 [shape = 'u8[8192]{0}', space=vmem, size = 0x2000, scoped, tag = 'input window, operand 6, single buffered']
    #allocation12 [shape = 's32[1]{0}', space=sflag, size = 0x4, scoped, tag = 'scoped memory for tpu_custom_call.1']
    #allocation13 [shape = 'u8[8192]{0}', space=vmem, size = 0x2000, scoped, tag = 'input window, operand 7, single buffered']
    #allocation14 [shape = 'u8[8192]{0}', space=vmem, size = 0x2000, scoped, tag = 'output window, operand 0, single buffered']
    %14 = vsyncpa [#allocation3], 0
    %15 = vsyncpa [#allocation6], 0
    %16 = vsyncpa [#allocation9], 0
    %17 = vsyncpa [#allocation12], 0
    %18 = vsyncpa [#allocation4], 0
    // Predicated region
    $region2: #{tpu_custom_call.1} parent=1 // pred_check
      _
    $region3: #{tpu_custom_call.1} parent=1 // pred_check_branch
      %20 = sbr.rel (0) target = $region5
    $region4: #{tpu_custom_call.1} parent=1 // pred_region
      %22 = vsyncadd [#allocation3], 0
      %s23 = sshll.u32 %s0, 4
      %s24 = int_to_ptr.hbm [resolvable:$true] %s23
      %s25 = sshll.u32 [#allocation2], 4
      %s26 = int_to_ptr.vmem [resolvable:$true] %s25
      %31 = dma.hbm_to_vmem [thread:$0]  %s24, 256, %s26, [#allocation3], 128, 128, 8
    $region5: #{tpu_custom_call.1} parent=1 // pred_fallthru
      _
    // Predicated region
    $region6: #{tpu_custom_call.1} parent=1 // pred_check
      _
    $region7: #{tpu_custom_call.1} parent=1 // pred_check_branch
      %33 = sbr.rel (0) target = $region9
    $region8: #{tpu_custom_call.1} parent=1 // pred_region
      %35 = vsyncadd [#allocation6], 0
      %s36 = sshll.u32 %s1, 4
      %s37 = int_to_ptr.hbm [resolvable:$true] %s36
      %s38 = sshll.u32 [#allocation5], 4
      %s39 = int_to_ptr.vmem [resolvable:$true] %s38
      %44 = dma.hbm_to_vmem [thread:$0]  %s37, 256, %s39, [#allocation6], 128, 128, 8
    $region9: #{tpu_custom_call.1} parent=1 // pred_fallthru
      _
    // Predicated region
    $region10: #{tpu_custom_call.1} parent=1 // pred_check
      _
    $region11: #{tpu_custom_call.1} parent=1 // pred_check_branch
      %46 = sbr.rel (0) target = $region13
    $region12: #{tpu_custom_call.1} parent=1 // pred_region
      %48 = vsyncadd [#allocation6], 0
      %s49 = sshll.u32 %s2, 4
      %s50 = int_to_ptr.hbm [resolvable:$true] %s49
      %s51 = sshll.u32 [#allocation7], 4
      %s52 = int_to_ptr.vmem [resolvable:$true] %s51
      %57 = dma.hbm_to_vmem [thread:$0]  %s50, 256, %s52, [#allocation6], 128, 128, 8
    $region13: #{tpu_custom_call.1} parent=1 // pred_fallthru
      _
    // Predicated region
    $region14: #{tpu_custom_call.1} parent=1 // pred_check
      _
    $region15: #{tpu_custom_call.1} parent=1 // pred_check_branch
      %59 = sbr.rel (0) target = $region17
    $region16: #{tpu_custom_call.1} parent=1 // pred_region
      _
    $region17: #{tpu_custom_call.1} parent=1 // pred_fallthru
      _
    // Predicated region
    $region18: #{tpu_custom_call.1} parent=1 // pred_check
      _
    $region19: #{tpu_custom_call.1} parent=1 // pred_check_branch
      %61 = sbr.rel (0) target = $region21
    $region20: #{tpu_custom_call.1} parent=1 // pred_region
      %63 = vsyncadd [#allocation9], 0
      %s64 = sshll.u32 %s4, 4
      %s65 = int_to_ptr.hbm [resolvable:$true] %s64
      %s66 = sshll.u32 [#allocation8], 4
      %s67 = int_to_ptr.vmem [resolvable:$true] %s66
      %72 = dma.hbm_to_vmem [thread:$0]  %s65, 256, %s67, [#allocation9], 64, 64, 4
    $region21: #{tpu_custom_call.1} parent=1 // pred_fallthru
      _
    // Predicated region
    $region22: #{tpu_custom_call.1} parent=1 // pred_check
      _
    $region23: #{tpu_custom_call.1} parent=1 // pred_check_branch
      %74 = sbr.rel (0) target = $region25
    $region24: #{tpu_custom_call.1} parent=1 // pred_region
      %76 = vsyncadd [#allocation9], 0
      %s77 = sshll.u32 %s5, 4
      %s78 = int_to_ptr.hbm [resolvable:$true] %s77
      %s79 = sshll.u32 [#allocation10], 4
      %s80 = int_to_ptr.vmem [resolvable:$true] %s79
      %85 = dma.hbm_to_vmem [thread:$0]  %s78, 256, %s80, [#allocation9], 64, 64, 4
    $region25: #{tpu_custom_call.1} parent=1 // pred_fallthru
      _
    // Predicated region
    $region26: #{tpu_custom_call.1} parent=1 // pred_check
      _
    $region27: #{tpu_custom_call.1} parent=1 // pred_check_branch
      %87 = sbr.rel (0) target = $region29
    $region28: #{tpu_custom_call.1} parent=1 // pred_region
      %89 = vsyncadd [#allocation12], 0
      %s90 = sshll.u32 %s6, 4
      %s91 = int_to_ptr.hbm [resolvable:$true] %s90
      %s92 = sshll.u32 [#allocation11], 4
      %s93 = int_to_ptr.vmem [resolvable:$true] %s92
      %98 = dma.hbm_to_vmem [thread:$0]  %s91, 256, %s93, [#allocation12], 64, 64, 4
    $region29: #{tpu_custom_call.1} parent=1 // pred_fallthru
      _
    // Predicated region
    $region30: #{tpu_custom_call.1} parent=1 // pred_check
      _
    $region31: #{tpu_custom_call.1} parent=1 // pred_check_branch
      %100 = sbr.rel (0) target = $region33
    $region32: #{tpu_custom_call.1} parent=1 // pred_region
      %102 = vsyncadd [#allocation12], 0
      %s103 = sshll.u32 %s7, 4
      %s104 = int_to_ptr.hbm [resolvable:$true] %s103
      %s105 = sshll.u32 [#allocation13], 4
      %s106 = int_to_ptr.vmem [resolvable:$true] %s105
      %111 = dma.hbm_to_vmem [thread:$0]  %s104, 256, %s106, [#allocation12], 64, 64, 4
    $region33: #{tpu_custom_call.1} parent=1 // pred_fallthru
      _
    // Predicated region
    $region34: #{tpu_custom_call.1} parent=1 // pred_check
      _
    $region35: #{tpu_custom_call.1} parent=1 // pred_check_branch
      %113 = sbr.rel (0) target = $region37
    $region36: #{tpu_custom_call.1} parent=1 // pred_region
      _
    $region37: #{tpu_custom_call.1} parent=1 // pred_fallthru
      _
    // Predicated region
    $region38: #{tpu_custom_call.1} parent=1 // pred_check
      _
    $region39: #{tpu_custom_call.1} parent=1 // pred_check_branch
      %115 = sbr.rel (0) target = $region41
    $region40: #{tpu_custom_call.1} parent=1 // pred_region
      %117 = dma.done [#allocation3], 256
    $region41: #{tpu_custom_call.1} parent=1 // pred_fallthru
      _
    // Predicated region
    $region42: #{tpu_custom_call.1} parent=1 // pred_check
      _
    $region43: #{tpu_custom_call.1} parent=1 // pred_check_branch
      %119 = sbr.rel (0) target = $region45
    $region44: #{tpu_custom_call.1} parent=1 // pred_region
      %121 = dma.done [#allocation6], 256
    $region45: #{tpu_custom_call.1} parent=1 // pred_fallthru
      _
    // Predicated region
    $region46: #{tpu_custom_call.1} parent=1 // pred_check
      _
    $region47: #{tpu_custom_call.1} parent=1 // pred_check_branch
      %123 = sbr.rel (0) target = $region49
    $region48: #{tpu_custom_call.1} parent=1 // pred_region
      %125 = dma.done [#allocation6], 256
    $region49: #{tpu_custom_call.1} parent=1 // pred_fallthru
      _
    // Predicated region
    $region50: #{tpu_custom_call.1} parent=1 // pred_check
      _
    $region51: #{tpu_custom_call.1} parent=1 // pred_check_branch
      %127 = sbr.rel (0) target = $region53
    $region52: #{tpu_custom_call.1} parent=1 // pred_region
      %129 = dma.done [#allocation9], 256
    $region53: #{tpu_custom_call.1} parent=1 // pred_fallthru
      _
    // Predicated region
    $region54: #{tpu_custom_call.1} parent=1 // pred_check
      _
    $region55: #{tpu_custom_call.1} parent=1 // pred_check_branch
      %131 = sbr.rel (0) target = $region57
    $region56: #{tpu_custom_call.1} parent=1 // pred_region
      %133 = dma.done [#allocation9], 256
    $region57: #{tpu_custom_call.1} parent=1 // pred_fallthru
      _
    // Predicated region
    $region58: #{tpu_custom_call.1} parent=1 // pred_check
      _
    $region59: #{tpu_custom_call.1} parent=1 // pred_check_branch
      %135 = sbr.rel (0) target = $region61
    $region60: #{tpu_custom_call.1} parent=1 // pred_region
      %137 = dma.done [#allocation12], 256
    $region61: #{tpu_custom_call.1} parent=1 // pred_fallthru
      _
    // Predicated region
    $region62: #{tpu_custom_call.1} parent=1 // pred_check
      _
    $region63: #{tpu_custom_call.1} parent=1 // pred_check_branch
      %139 = sbr.rel (0) target = $region65
    $region64: #{tpu_custom_call.1} parent=1 // pred_region
      %141 = dma.done [#allocation12], 256
    $region65: #{tpu_custom_call.1} parent=1 // pred_fallthru
      _
    %v143 = vld [vmem:[#allocation2] sm:$0xff]
    %v144 = vld [vmem:[#allocation2 + $0x8] sm:$0xff]
    %v145 = vpack.c.bf16 %v144, %v143
    %v146 = vld [vmem:[#allocation5] sm:$0xff]
    %v147 = vld [vmem:[#allocation5 + $0x8] sm:$0xff]
    %v148 = vpack.c.bf16 %v147, %v146
    %v149 = vld [vmem:[#allocation7] sm:$0xff]
    %v150 = vld [vmem:[#allocation7 + $0x8] sm:$0xff]
    %v151 = vpack.c.bf16 %v150, %v149
    %v152 = vld [vmem:[#allocation8] sm:$0xf]
    %v153 = vld [vmem:[#allocation8 + $0x4] sm:$0xf]
    %v154 = vld [vmem:[#allocation8 + $0x8] sm:$0xf]
    %v155 = vld [vmem:[#allocation8 + $0xc] sm:$0xf]
    %v160 = vunpack.c.l.b16 %v152
    %v161 = vunpack.c.l.b16 %v153
    %v162 = vunpack.c.l.b16 %v154
    %v163 = vunpack.c.l.b16 %v155
    %v164 = vpack.c.b16 %v161, %v160
    %v165 = vpack.c.b16 %v163, %v162
    %vm168 = vcmask 261120
    %v170 = vsel %vm168, %v145, 0
    %172 = vmatpush.bf16.msra.mxu0 0
    %173 = vmatpush.bf16.msra.mxu0 0
    %174 = vmatpush.bf16.msra.mxu0 0
    %175 = vmatpush.bf16.msra.mxu0 0
    %176 = vmatpush.bf16.msra.mxu0 0
    %177 = vmatpush.bf16.msra.mxu0 0
    %178 = vmatpush.bf16.msra.mxu0 %v165
    %179 = vmatpush.bf16.msra.mxu0 %v164
    %180 = vmatmul.bf16.gmra.mxu0 %v170
    %v181 = vpop.f32.mrf.mxu0
    %v182 = vadd.f32 0.0, %v181
    %v183 = vpop.f32.mrf.mxu0
    %v184 = vadd.f32 0.0, %v183
    %185 = vdwg.mxu0
    %v186 = vpack.c.bf16 %v182, %v182
    %v187 = vpack.c.bf16 %v184, %v184
    %v188 = vld [vmem:[#allocation10] sm:$0xf]
    %v189 = vld [vmem:[#allocation10 + $0x4] sm:$0xf]
    %v190 = vld [vmem:[#allocation10 + $0x8] sm:$0xf]
    %v191 = vld [vmem:[#allocation10 + $0xc] sm:$0xf]
    %v196 = vunpack.c.l.b16 %v188
    %v197 = vunpack.c.l.b16 %v189
    %v198 = vunpack.c.l.b16 %v190
    %v199 = vunpack.c.l.b16 %v191
    %v200 = vpack.c.b16 %v197, %v196
    %v201 = vpack.c.b16 %v199, %v198
    %v205 = vsel %vm168, %v148, 0
    %207 = vmatpush.bf16.msra.mxu0 0
    %208 = vmatpush.bf16.msra.mxu0 0
    %209 = vmatpush.bf16.msra.mxu0 0
    %210 = vmatpush.bf16.msra.mxu0 0
    %211 = vmatpush.bf16.msra.mxu0 0
    %212 = vmatpush.bf16.msra.mxu0 0
    %213 = vmatpush.bf16.msra.mxu0 %v201
    %214 = vmatpush.bf16.msra.mxu0 %v200
    %215 = vmatmul.bf16.gmra.mxu0 %v205
    %v216 = vpop.f32.mrf.mxu0
    %v217 = vadd.f32 0.0, %v216
    %v218 = vpop.f32.mrf.mxu0
    %v219 = vadd.f32 0.0, %v218
    %220 = vdwg.mxu0
    %v221 = vpack.c.bf16 %v217, %v217
    %v222 = vpack.c.bf16 %v219, %v219
    %v223 = vld [vmem:[#allocation11] sm:$0xf]
    %v224 = vld [vmem:[#allocation11 + $0x4] sm:$0xf]
    %v225 = vld [vmem:[#allocation11 + $0x8] sm:$0xf]
    %v226 = vld [vmem:[#allocation11 + $0xc] sm:$0xf]
    %v231 = vunpack.c.l.b16 %v223
    %v232 = vunpack.c.l.b16 %v224
    %v233 = vunpack.c.l.b16 %v225
    %v234 = vunpack.c.l.b16 %v226
    %v235 = vpack.c.b16 %v232, %v231
    %v236 = vpack.c.b16 %v234, %v233
    %v240 = vsel %vm168, %v151, 0
    %242 = vmatpush.bf16.msra.mxu0 0
    %243 = vmatpush.bf16.msra.mxu0 0
    %244 = vmatpush.bf16.msra.mxu0 0
    %245 = vmatpush.bf16.msra.mxu0 0
    %246 = vmatpush.bf16.msra.mxu0 0
    %247 = vmatpush.bf16.msra.mxu0 0
    %248 = vmatpush.bf16.msra.mxu0 %v236
    %249 = vmatpush.bf16.msra.mxu0 %v235
    %250 = vmatmul.bf16.gmra.mxu0 %v240
    %v251 = vpop.f32.mrf.mxu0
    %v252 = vadd.f32 0.0, %v251
    %v253 = vpop.f32.mrf.mxu0
    %v254 = vadd.f32 0.0, %v253
    %255 = vdwg.mxu0
    %v256 = vpack.c.bf16 %v252, %v252
    %v257 = vpack.c.bf16 %v254, %v254
    %v258 = vld [vmem:[%s3] sm:$0x1]
    %v259 = vld [vmem:[%s3 + $0x1] sm:$0x1]
    %v262 = vperm.slane %v258, 0
    %v263 = vperm.slane %v259, 0
    %v266 = vld [vmem:[#allocation13] sm:$0xf]
    %v267 = vld [vmem:[#allocation13 + $0x4] sm:$0xf]
    %v268 = vld [vmem:[#allocation13 + $0x8] sm:$0xf]
    %v269 = vld [vmem:[#allocation13 + $0xc] sm:$0xf]
    %v270 = vld [vmem:[%s8] sm:$0x1]
    %vm271 = vcmask 64512
    %v273 = vsel %vm271, %v186, 0
    %v276 = vsel %vm271, %v221, 0
    %278 = vmatpush.bf16.xpose.msra.mxu0 0
    %279 = vmatpush.bf16.xpose.msra.mxu0 0
    %280 = vmatpush.bf16.xpose.msra.mxu0 0
    %281 = vmatpush.bf16.xpose.msra.mxu0 0
    %282 = vmatpush.bf16.xpose.msra.mxu0 0
    %283 = vmatpush.bf16.xpose.msra.mxu0 0
    %284 = vmatpush.bf16.xpose.msra.mxu0 0
    %285 = vmatpush.bf16.xpose.msra.mxu0 %v276
    %286 = vmatmul.bf16.gmra.mxu0 %v273
    %v287 = vpop.f32.mrf.mxu0
    %v288 = vadd.f32 %v262, %v287
    %v289 = vpop.f32.mrf.mxu0
    %290 = vdwg.mxu0
    %v292 = vsel %vm271, %v187, 0
    %v295 = vsel %vm271, %v222, 0
    %297 = vmatpush.bf16.xpose.msra.mxu0 0
    %298 = vmatpush.bf16.xpose.msra.mxu0 0
    %299 = vmatpush.bf16.xpose.msra.mxu0 0
    %300 = vmatpush.bf16.xpose.msra.mxu0 0
    %301 = vmatpush.bf16.xpose.msra.mxu0 0
    %302 = vmatpush.bf16.xpose.msra.mxu0 0
    %303 = vmatpush.bf16.xpose.msra.mxu0 0
    %304 = vmatpush.bf16.xpose.msra.mxu0 %v295
    %305 = vmatmul.bf16.gmra.mxu0 %v292
    %v306 = vpop.f32.mrf.mxu0
    %v307 = vadd.f32 %v263, %v306
    %v308 = vpop.f32.mrf.mxu0
    %309 = vdwg.mxu0
    %v310 = vsel %vm271, %v288, -inf
    %311 = vmax.xlane.f32.xlu0 %v310
    %v312 = vpop.xlane.xlu0 %311
    %v313 = vsel %vm271, %v307, -inf
    %314 = vmax.xlane.f32.xlu0 %v313
    %v315 = vpop.xlane.xlu0 %314
    %v316 = vsub.f32 %v288, %v312
    %v317 = vsub.f32 %v307, %v315
    %v318 = vmul.f32 %v316, 1.442695
    %v319 = vpow.pop %v318
    %v320 = vmul.f32 %v317, 1.442695
    %v321 = vpow.pop %v320
    %v322 = vsel %vm271, %v319, 0.0
    %323 = vadd.xlane.f32.xlu0 %v322
    %v324 = vpop.xlane.xlu0 %323
    %v325 = vsel %vm271, %v321, 0.0
    %326 = vadd.xlane.f32.xlu0 %v325
    %v327 = vpop.xlane.xlu0 %326
    %v328 = vrcp.pop %v324
    %v329 = vrcp.pop %v327
    %v330 = vmul.f32 %v319, %v328
    %v331 = vmul.f32 %v321, %v329
    %v332 = vpack.c.bf16 %v330, %v330
    %v333 = vpack.c.bf16 %v331, %v331
    %v335 = vsel %vm271, %v332, 0
    %vm337 = vcmask 1043456
    %v339 = vsel %vm337, %v256, 0
    %341 = vmatpush.bf16.msra.mxu0 0
    %342 = vmatpush.bf16.msra.mxu0 0
    %343 = vmatpush.bf16.msra.mxu0 0
    %344 = vmatpush.bf16.msra.mxu0 0
    %345 = vmatpush.bf16.msra.mxu0 0
    %346 = vmatpush.bf16.msra.mxu0 0
    %347 = vmatpush.bf16.msra.mxu0 0
    %348 = vmatpush.bf16.msra.mxu0 %v339
    %349 = vmatmul.bf16.gmra.mxu0 %v335
    %v350 = vpop.f32.mrf.mxu0
    %v351 = vadd.f32 0.0, %v350
    %v352 = vpop.f32.mrf.mxu0
    %353 = vdwg.mxu0
    %v355 = vsel %vm271, %v333, 0
    %v358 = vsel %vm337, %v257, 0
    %360 = vmatpush.bf16.msra.mxu0 0
    %361 = vmatpush.bf16.msra.mxu0 0
    %362 = vmatpush.bf16.msra.mxu0 0
    %363 = vmatpush.bf16.msra.mxu0 0
    %364 = vmatpush.bf16.msra.mxu0 0
    %365 = vmatpush.bf16.msra.mxu0 0
    %366 = vmatpush.bf16.msra.mxu0 0
    %367 = vmatpush.bf16.msra.mxu0 %v358
    %368 = vmatmul.bf16.gmra.mxu0 %v355
    %v369 = vpop.f32.mrf.mxu0
    %v370 = vadd.f32 0.0, %v369
    %v371 = vpop.f32.mrf.mxu0
    %372 = vdwg.mxu0
    %v373 = vpack.c.bf16 %v370, %v351
    %v375 = vunpack.c.l.b16 %v186
    %v376 = vpack.c.b16 %v375, %v375
    %377 = vrot.lane.b32.xlu0 %v376, 120
    %v378 = vpop.permute.xlu0 %377
    %v380 = vunpack.c.l.b16 %v221
    %v381 = vpack.c.b16 %v380, %v380
    %382 = vrot.lane.b32.xlu0 %v381, 120
    %v383 = vpop.permute.xlu0 %382
    %v385 = vsel %vm271, %v378, 0
    %v388 = vsel %vm271, %v383, 0
    %390 = vmatpush.bf16.xpose.msra.mxu0 0
    %391 = vmatpush.bf16.xpose.msra.mxu0 0
    %392 = vmatpush.bf16.xpose.msra.mxu0 0
    %393 = vmatpush.bf16.xpose.msra.mxu0 0
    %394 = vmatpush.bf16.xpose.msra.mxu0 0
    %395 = vmatpush.bf16.xpose.msra.mxu0 0
    %396 = vmatpush.bf16.xpose.msra.mxu0 0
    %397 = vmatpush.bf16.xpose.msra.mxu0 %v388
    %398 = vmatmul.bf16.gmra.mxu0 %v385
    %v399 = vpop.f32.mrf.mxu0
    %v400 = vadd.f32 %v262, %v399
    %v401 = vpop.f32.mrf.mxu0
    %402 = vdwg.mxu0
    %v404 = vunpack.c.l.b16 %v187
    %v405 = vpack.c.b16 %v404, %v404
    %406 = vrot.lane.b32.xlu0 %v405, 120
    %v407 = vpop.permute.xlu0 %406
    %v409 = vunpack.c.l.b16 %v222
    %v410 = vpack.c.b16 %v409, %v409
    %411 = vrot.lane.b32.xlu0 %v410, 120
    %v412 = vpop.permute.xlu0 %411
    %v414 = vsel %vm271, %v407, 0
    %v417 = vsel %vm271, %v412, 0
    %419 = vmatpush.bf16.xpose.msra.mxu0 0
    %420 = vmatpush.bf16.xpose.msra.mxu0 0
    %421 = vmatpush.bf16.xpose.msra.mxu0 0
    %422 = vmatpush.bf16.xpose.msra.mxu0 0
    %423 = vmatpush.bf16.xpose.msra.mxu0 0
    %424 = vmatpush.bf16.xpose.msra.mxu0 0
    %425 = vmatpush.bf16.xpose.msra.mxu0 0
    %426 = vmatpush.bf16.xpose.msra.mxu0 %v417
    %427 = vmatmul.bf16.gmra.mxu0 %v414
    %v428 = vpop.f32.mrf.mxu0
    %v429 = vadd.f32 %v263, %v428
    %v430 = vpop.f32.mrf.mxu0
    %431 = vdwg.mxu0
    %v432 = vsel %vm271, %v400, -inf
    %433 = vmax.xlane.f32.xlu0 %v432
    %v434 = vpop.xlane.xlu0 %433
    %v435 = vsel %vm271, %v429, -inf
    %436 = vmax.xlane.f32.xlu0 %v435
    %v437 = vpop.xlane.xlu0 %436
    %v438 = vsub.f32 %v400, %v434
    %v439 = vsub.f32 %v429, %v437
    %v440 = vmul.f32 %v438, 1.442695
    %v441 = vpow.pop %v440
    %v442 = vmul.f32 %v439, 1.442695
    %v443 = vpow.pop %v442
    %v444 = vsel %vm271, %v441, 0.0
    %445 = vadd.xlane.f32.xlu0 %v444
    %v446 = vpop.xlane.xlu0 %445
    %v447 = vsel %vm271, %v443, 0.0
    %448 = vadd.xlane.f32.xlu0 %v447
    %v449 = vpop.xlane.xlu0 %448
    %v450 = vrcp.pop %v446
    %v451 = vrcp.pop %v449
    %v452 = vmul.f32 %v441, %v450
    %v453 = vmul.f32 %v443, %v451
    %v454 = vpack.c.bf16 %v452, %v452
    %v455 = vpack.c.bf16 %v453, %v453
    %v457 = vunpack.c.l.b16 %v256
    %v458 = vpack.c.b16 %v457, %v457
    %459 = vrot.lane.b32.xlu0 %v458, 120
    %v460 = vpop.permute.xlu0 %459
    %v462 = vsel %vm271, %v454, 0
    %v465 = vsel %vm337, %v460, 0
    %467 = vmatpush.bf16.msra.mxu0 0
    %468 = vmatpush.bf16.msra.mxu0 0
    %469 = vmatpush.bf16.msra.mxu0 0
    %470 = vmatpush.bf16.msra.mxu0 0
    %471 = vmatpush.bf16.msra.mxu0 0
    %472 = vmatpush.bf16.msra.mxu0 0
    %473 = vmatpush.bf16.msra.mxu0 0
    %474 = vmatpush.bf16.msra.mxu0 %v465
    %475 = vmatmul.bf16.gmra.mxu0 %v462
    %v476 = vpop.f32.mrf.mxu0
    %v477 = vadd.f32 0.0, %v476
    %v478 = vpop.f32.mrf.mxu0
    %479 = vdwg.mxu0
    %v481 = vunpack.c.l.b16 %v257
    %v482 = vpack.c.b16 %v481, %v481
    %483 = vrot.lane.b32.xlu0 %v482, 120
    %v484 = vpop.permute.xlu0 %483
    %v486 = vsel %vm271, %v455, 0
    %v489 = vsel %vm337, %v484, 0
    %491 = vmatpush.bf16.msra.mxu0 0
    %492 = vmatpush.bf16.msra.mxu0 0
    %493 = vmatpush.bf16.msra.mxu0 0
    %494 = vmatpush.bf16.msra.mxu0 0
    %495 = vmatpush.bf16.msra.mxu0 0
    %496 = vmatpush.bf16.msra.mxu0 0
    %497 = vmatpush.bf16.msra.mxu0 0
    %498 = vmatpush.bf16.msra.mxu0 %v489
    %499 = vmatmul.bf16.gmra.mxu0 %v486
    %v500 = vpop.f32.mrf.mxu0
    %v501 = vadd.f32 0.0, %v500
    %v502 = vpop.f32.mrf.mxu0
    %503 = vdwg.mxu0
    %v504 = vpack.c.bf16 %v501, %v477
    %v506 = vsel %vm271, %v504, 0
    %v509 = vsel %vm337, %v267, 0
    %511 = vmatpush.bf16.msra.mxu0 0
    %512 = vmatpush.bf16.msra.mxu0 0
    %513 = vmatpush.bf16.msra.mxu0 0
    %514 = vmatpush.bf16.msra.mxu0 0
    %515 = vmatpush.bf16.msra.mxu0 0
    %516 = vmatpush.bf16.msra.mxu0 0
    %517 = vmatpush.bf16.msra.mxu0 0
    %518 = vmatpush.bf16.msra.mxu0 %v509
    %519 = vmatmul.bf16.gmra.mxu0 %v506
    %v520 = vpop.f32.mrf.mxu0
    %v521 = vadd.f32 0.0, %v520
    %v522 = vpop.f32.mrf.mxu0
    %v523 = vadd.f32 0.0, %v522
    %524 = vdwg.mxu0
    %v526 = vsel %vm271, %v373, 0
    %v529 = vsel %vm337, %v266, 0
    %531 = vmatpush.bf16.msra.mxu0 0
    %532 = vmatpush.bf16.msra.mxu0 0
    %533 = vmatpush.bf16.msra.mxu0 0
    %534 = vmatpush.bf16.msra.mxu0 0
    %535 = vmatpush.bf16.msra.mxu0 0
    %536 = vmatpush.bf16.msra.mxu0 0
    %537 = vmatpush.bf16.msra.mxu0 0
    %538 = vmatpush.bf16.msra.mxu0 %v529
    %539 = vmatmul.bf16.gmra.mxu0 %v526
    %v540 = vpop.f32.mrf.mxu0
    %v541 = vadd.f32 %v521, %v540
    %v542 = vpop.f32.mrf.mxu0
    %v543 = vadd.f32 %v523, %v542
    %544 = vdwg.mxu0
    %545 = vrot.lane.b32.xlu0 %v376, 112
    %v546 = vpop.permute.xlu0 %545
    %547 = vrot.lane.b32.xlu0 %v381, 112
    %v548 = vpop.permute.xlu0 %547
    %v550 = vsel %vm271, %v546, 0
    %v553 = vsel %vm271, %v548, 0
    %555 = vmatpush.bf16.xpose.msra.mxu0 0
    %556 = vmatpush.bf16.xpose.msra.mxu0 0
    %557 = vmatpush.bf16.xpose.msra.mxu0 0
    %558 = vmatpush.bf16.xpose.msra.mxu0 0
    %559 = vmatpush.bf16.xpose.msra.mxu0 0
    %560 = vmatpush.bf16.xpose.msra.mxu0 0
    %561 = vmatpush.bf16.xpose.msra.mxu0 0
    %562 = vmatpush.bf16.xpose.msra.mxu0 %v553
    %563 = vmatmul.bf16.gmra.mxu0 %v550
    %v564 = vpop.f32.mrf.mxu0
    %v565 = vadd.f32 %v262, %v564
    %v566 = vpop.f32.mrf.mxu0
    %567 = vdwg.mxu0
    %568 = vrot.lane.b32.xlu0 %v405, 112
    %v569 = vpop.permute.xlu0 %568
    %570 = vrot.lane.b32.xlu0 %v410, 112
    %v571 = vpop.permute.xlu0 %570
    %v573 = vsel %vm271, %v569, 0
    %v576 = vsel %vm271, %v571, 0
    %578 = vmatpush.bf16.xpose.msra.mxu0 0
    %579 = vmatpush.bf16.xpose.msra.mxu0 0
    %580 = vmatpush.bf16.xpose.msra.mxu0 0
    %581 = vmatpush.bf16.xpose.msra.mxu0 0
    %582 = vmatpush.bf16.xpose.msra.mxu0 0
    %583 = vmatpush.bf16.xpose.msra.mxu0 0
    %584 = vmatpush.bf16.xpose.msra.mxu0 0
    %585 = vmatpush.bf16.xpose.msra.mxu0 %v576
    %586 = vmatmul.bf16.gmra.mxu0 %v573
    %v587 = vpop.f32.mrf.mxu0
    %v588 = vadd.f32 %v263, %v587
    %v589 = vpop.f32.mrf.mxu0
    %590 = vdwg.mxu0
    %v591 = vsel %vm271, %v565, -inf
    %592 = vmax.xlane.f32.xlu0 %v591
    %v593 = vpop.xlane.xlu0 %592
    %v594 = vsel %vm271, %v588, -inf
    %595 = vmax.xlane.f32.xlu0 %v594
    %v596 = vpop.xlane.xlu0 %595
    %v597 = vsub.f32 %v565, %v593
    %v598 = vsub.f32 %v588, %v596
    %v599 = vmul.f32 %v597, 1.442695
    %v600 = vpow.pop %v599
    %v601 = vmul.f32 %v598, 1.442695
    %v602 = vpow.pop %v601
    %v603 = vsel %vm271, %v600, 0.0
    %604 = vadd.xlane.f32.xlu0 %v603
    %v605 = vpop.xlane.xlu0 %604
    %v606 = vsel %vm271, %v602, 0.0
    %607 = vadd.xlane.f32.xlu0 %v606
    %v608 = vpop.xlane.xlu0 %607
    %v609 = vrcp.pop %v605
    %v610 = vrcp.pop %v608
    %v611 = vmul.f32 %v600, %v609
    %v612 = vmul.f32 %v602, %v610
    %v613 = vpack.c.bf16 %v611, %v611
    %v614 = vpack.c.bf16 %v612, %v612
    %615 = vrot.lane.b32.xlu0 %v458, 112
    %v616 = vpop.permute.xlu0 %615
    %v618 = vsel %vm271, %v613, 0
    %v621 = vsel %vm337, %v616, 0
    %623 = vmatpush.bf16.msra.mxu0 0
    %624 = vmatpush.bf16.msra.mxu0 0
    %625 = vmatpush.bf16.msra.mxu0 0
    %626 = vmatpush.bf16.msra.mxu0 0
    %627 = vmatpush.bf16.msra.mxu0 0
    %628 = vmatpush.bf16.msra.mxu0 0
    %629 = vmatpush.bf16.msra.mxu0 0
    %630 = vmatpush.bf16.msra.mxu0 %v621
    %631 = vmatmul.bf16.gmra.mxu0 %v618
    %v632 = vpop.f32.mrf.mxu0
    %v633 = vadd.f32 0.0, %v632
    %v634 = vpop.f32.mrf.mxu0
    %635 = vdwg.mxu0
    %636 = vrot.lane.b32.xlu0 %v482, 112
    %v637 = vpop.permute.xlu0 %636
    %v639 = vsel %vm271, %v614, 0
    %v642 = vsel %vm337, %v637, 0
    %644 = vmatpush.bf16.msra.mxu0 0
    %645 = vmatpush.bf16.msra.mxu0 0
    %646 = vmatpush.bf16.msra.mxu0 0
    %647 = vmatpush.bf16.msra.mxu0 0
    %648 = vmatpush.bf16.msra.mxu0 0
    %649 = vmatpush.bf16.msra.mxu0 0
    %650 = vmatpush.bf16.msra.mxu0 0
    %651 = vmatpush.bf16.msra.mxu0 %v642
    %652 = vmatmul.bf16.gmra.mxu0 %v639
    %v653 = vpop.f32.mrf.mxu0
    %v654 = vadd.f32 0.0, %v653
    %v655 = vpop.f32.mrf.mxu0
    %656 = vdwg.mxu0
    %v657 = vpack.c.bf16 %v654, %v633
    %v659 = vsel %vm271, %v657, 0
    %v662 = vsel %vm337, %v268, 0
    %664 = vmatpush.bf16.msra.mxu0 0
    %665 = vmatpush.bf16.msra.mxu0 0
    %666 = vmatpush.bf16.msra.mxu0 0
    %667 = vmatpush.bf16.msra.mxu0 0
    %668 = vmatpush.bf16.msra.mxu0 0
    %669 = vmatpush.bf16.msra.mxu0 0
    %670 = vmatpush.bf16.msra.mxu0 0
    %671 = vmatpush.bf16.msra.mxu0 %v662
    %672 = vmatmul.bf16.gmra.mxu0 %v659
    %v673 = vpop.f32.mrf.mxu0
    %v674 = vadd.f32 0.0, %v673
    %v675 = vpop.f32.mrf.mxu0
    %v676 = vadd.f32 0.0, %v675
    %677 = vdwg.mxu0
    %v678 = vadd.f32 %v541, %v674
    %v679 = vadd.f32 %v543, %v676
    %680 = vrot.lane.b32.xlu0 %v376, 104
    %v681 = vpop.permute.xlu0 %680
    %682 = vrot.lane.b32.xlu0 %v381, 104
    %v683 = vpop.permute.xlu0 %682
    %v685 = vsel %vm271, %v681, 0
    %v688 = vsel %vm271, %v683, 0
    %690 = vmatpush.bf16.xpose.msra.mxu0 0
    %691 = vmatpush.bf16.xpose.msra.mxu0 0
    %692 = vmatpush.bf16.xpose.msra.mxu0 0
    %693 = vmatpush.bf16.xpose.msra.mxu0 0
    %694 = vmatpush.bf16.xpose.msra.mxu0 0
    %695 = vmatpush.bf16.xpose.msra.mxu0 0
    %696 = vmatpush.bf16.xpose.msra.mxu0 0
    %697 = vmatpush.bf16.xpose.msra.mxu0 %v688
    %698 = vmatmul.bf16.gmra.mxu0 %v685
    %v699 = vpop.f32.mrf.mxu0
    %v700 = vadd.f32 %v262, %v699
    %v701 = vpop.f32.mrf.mxu0
    %702 = vdwg.mxu0
    %703 = vrot.lane.b32.xlu0 %v405, 104
    %v704 = vpop.permute.xlu0 %703
    %705 = vrot.lane.b32.xlu0 %v410, 104
    %v706 = vpop.permute.xlu0 %705
    %v708 = vsel %vm271, %v704, 0
    %v711 = vsel %vm271, %v706, 0
    %713 = vmatpush.bf16.xpose.msra.mxu0 0
    %714 = vmatpush.bf16.xpose.msra.mxu0 0
    %715 = vmatpush.bf16.xpose.msra.mxu0 0
    %716 = vmatpush.bf16.xpose.msra.mxu0 0
    %717 = vmatpush.bf16.xpose.msra.mxu0 0
    %718 = vmatpush.bf16.xpose.msra.mxu0 0
    %719 = vmatpush.bf16.xpose.msra.mxu0 0
    %720 = vmatpush.bf16.xpose.msra.mxu0 %v711
    %721 = vmatmul.bf16.gmra.mxu0 %v708
    %v722 = vpop.f32.mrf.mxu0
    %v723 = vadd.f32 %v263, %v722
    %v724 = vpop.f32.mrf.mxu0
    %725 = vdwg.mxu0
    %v726 = vsel %vm271, %v700, -inf
    %727 = vmax.xlane.f32.xlu0 %v726
    %v728 = vpop.xlane.xlu0 %727
    %v729 = vsel %vm271, %v723, -inf
    %730 = vmax.xlane.f32.xlu0 %v729
    %v731 = vpop.xlane.xlu0 %730
    %v732 = vsub.f32 %v700, %v728
    %v733 = vsub.f32 %v723, %v731
    %v734 = vmul.f32 %v732, 1.442695
    %v735 = vpow.pop %v734
    %v736 = vmul.f32 %v733, 1.442695
    %v737 = vpow.pop %v736
    %v738 = vsel %vm271, %v735, 0.0
    %739 = vadd.xlane.f32.xlu0 %v738
    %v740 = vpop.xlane.xlu0 %739
    %v741 = vsel %vm271, %v737, 0.0
    %742 = vadd.xlane.f32.xlu0 %v741
    %v743 = vpop.xlane.xlu0 %742
    %v744 = vrcp.pop %v740
    %v745 = vrcp.pop %v743
    %v746 = vmul.f32 %v735, %v744
    %v747 = vmul.f32 %v737, %v745
    %v748 = vpack.c.bf16 %v746, %v746
    %v749 = vpack.c.bf16 %v747, %v747
    %750 = vrot.lane.b32.xlu0 %v458, 104
    %v751 = vpop.permute.xlu0 %750
    %v753 = vsel %vm271, %v748, 0
    %v756 = vsel %vm337, %v751, 0
    %758 = vmatpush.bf16.msra.mxu0 0
    %759 = vmatpush.bf16.msra.mxu0 0
    %760 = vmatpush.bf16.msra.mxu0 0
    %761 = vmatpush.bf16.msra.mxu0 0
    %762 = vmatpush.bf16.msra.mxu0 0
    %763 = vmatpush.bf16.msra.mxu0 0
    %764 = vmatpush.bf16.msra.mxu0 0
    %765 = vmatpush.bf16.msra.mxu0 %v756
    %766 = vmatmul.bf16.gmra.mxu0 %v753
    %v767 = vpop.f32.mrf.mxu0
    %v768 = vadd.f32 0.0, %v767
    %v769 = vpop.f32.mrf.mxu0
    %770 = vdwg.mxu0
    %771 = vrot.lane.b32.xlu0 %v482, 104
    %v772 = vpop.permute.xlu0 %771
    %v774 = vsel %vm271, %v749, 0
    %v777 = vsel %vm337, %v772, 0
    %779 = vmatpush.bf16.msra.mxu0 0
    %780 = vmatpush.bf16.msra.mxu0 0
    %781 = vmatpush.bf16.msra.mxu0 0
    %782 = vmatpush.bf16.msra.mxu0 0
    %783 = vmatpush.bf16.msra.mxu0 0
    %784 = vmatpush.bf16.msra.mxu0 0
    %785 = vmatpush.bf16.msra.mxu0 0
    %786 = vmatpush.bf16.msra.mxu0 %v777
    %787 = vmatmul.bf16.gmra.mxu0 %v774
    %v788 = vpop.f32.mrf.mxu0
    %v789 = vadd.f32 0.0, %v788
    %v790 = vpop.f32.mrf.mxu0
    %791 = vdwg.mxu0
    %v792 = vpack.c.bf16 %v789, %v768
    %v794 = vsel %vm271, %v792, 0
    %v797 = vsel %vm337, %v269, 0
    %799 = vmatpush.bf16.msra.mxu0 0
    %800 = vmatpush.bf16.msra.mxu0 0
    %801 = vmatpush.bf16.msra.mxu0 0
    %802 = vmatpush.bf16.msra.mxu0 0
    %803 = vmatpush.bf16.msra.mxu0 0
    %804 = vmatpush.bf16.msra.mxu0 0
    %805 = vmatpush.bf16.msra.mxu0 0
    %806 = vmatpush.bf16.msra.mxu0 %v797
    %807 = vmatmul.bf16.gmra.mxu0 %v794
    %v808 = vpop.f32.mrf.mxu0
    %v809 = vadd.f32 0.0, %v808
    %v810 = vpop.f32.mrf.mxu0
    %v811 = vadd.f32 0.0, %v810
    %812 = vdwg.mxu0
    %v813 = vadd.f32 %v678, %v809
    %v814 = vadd.f32 %v679, %v811
    %v816 = vperm.slane %v270, 0
    %v818 = vadd.f32 %v813, %v816
    %v819 = vadd.f32 %v814, %v816
    %820 = vst.msk [vmem:[#allocation14] sm:$0xff] %vm168, %v818
    %821 = vst.msk [vmem:[#allocation14 + $0x8] sm:$0xff] %vm168, %v819
    // Predicated region
    $region66: #{tpu_custom_call.1} parent=1 // pred_check
      _
    $region67: #{tpu_custom_call.1} parent=1 // pred_check_branch
      %823 = sbr.rel (0) target = $region69
    $region68: #{tpu_custom_call.1} parent=1 // pred_region
      %825 = vsyncadd [#allocation4], 0
      %s826 = sshll.u32 [#allocation14], 4
      %s827 = int_to_ptr.vmem [resolvable:$true] %s826
      %s828 = sshll.u32 %s9, 4
      %s829 = int_to_ptr.hbm [resolvable:$true] %s828
      %834 = dma.vmem_to_hbm [thread:$0]  %s827, 256, %s829, [#allocation4], 128, 128, 8
    $region69: #{tpu_custom_call.1} parent=1 // pred_fallthru
      _
    // Predicated region
    $region70: #{tpu_custom_call.1} parent=1 // pred_check
      _
    $region71: #{tpu_custom_call.1} parent=1 // pred_check_branch
      %836 = sbr.rel (0) target = $region73
    $region72: #{tpu_custom_call.1} parent=1 // pred_region
      %838 = dma.done [#allocation4], 256
    $region73: #{tpu_custom_call.1} parent=1 // pred_fallthru
      _
    %839 = vsyncpa [#allocation3], 1
    %840 = vsyncpa [#allocation6], 1
    %841 = vsyncpa [#allocation9], 1
    %842 = vsyncpa [#allocation12], 1
    %843 = vsyncpa [#allocation4], 1

</llo_original>
